<compile_context>
chip_gen: v6e
topology: v6e:2x2x1
jax: 0.10.0
libtpu: 0.0.40
codegen_flags: <defaults>
</compile_context>

<pallas_src>
import functools

import numpy as np
import jax
import jax.numpy as jnp
from jax.experimental import pallas as pl
from jax.experimental.pallas import tpu as pltpu

PIXEL_WEIGHT = 2.0  # module default pixel_weight=2


# ----------------------------- static helpers --------------------------------

def _round_up(x, m):
    return (x + m - 1) // m * m


def _nearest_indices(in_size, out_size):
    # F.interpolate(mode='nearest') (PyTorch default): src = floor(dst * in/out)
    idx = np.floor(np.arange(out_size) * (in_size / float(out_size))).astype(np.int64)
    return np.minimum(idx, in_size - 1)


def _selection_and_scale(H, W, layer_shapes, layer_sizes, seg_sizes, N, C_img):
    """One-hot selection matrix (HW, S) with 128-padded per-layer segments, plus a
    per-column scale row folding each layer's 1/(N*C*s_l) mean (0 on pad columns)."""
    HW = H * W
    S = int(sum(seg_sizes))
    sel = np.zeros((HW, S), np.float32)
    scale = np.zeros((1, S), np.float32)
    off = 0
    for (h, w), s, sp in zip(layer_shapes, layer_sizes, seg_sizes):
        hi = _nearest_indices(H, h)
        wi = _nearest_indices(W, w)
        src = (hi[:, None] * W + wi[None, :]).reshape(-1)       # flattened source pixel
        sel[src, off + np.arange(s)] = 1.0
        scale[0, off:off + s] = 1.0 / float(N * C_img * s)
        off += sp
    return sel, scale


def _pick_block_and_vmem(N, C_img, C_cls, HW, S):
    """Generation-aware batch block size and scoped-VMEM limit."""
    try:
        info = pltpu.get_tpu_info()
        vmem_phys = int(getattr(info, "vmem_capacity_bytes", 64 * 1024 * 1024))
    except Exception:
        vmem_phys = 64 * 1024 * 1024                              # conservative (v7x)
    vmem_limit = max(32 * 1024 * 1024, min(vmem_phys * 3 // 4, 96 * 1024 * 1024))

    # Constant per-call VMEM: bf16 selection matrix (double-buffered) + scale row.
    const_bytes = 2 * (2 * HW * S) + 2 * 4 * S
    # Per-batch-row, double-buffered f32 blocks: om, tm, target, lwm slab, weight out.
    per_row = 2 * 4 * (C_cls * HW + HW + C_img * HW + C_img * S + HW)
    budget = max(vmem_limit - const_bytes - (8 << 20), per_row * 8)
    bblk = max(8, (budget // per_row) // 8 * 8)
    bblk = min(bblk, _round_up(N, 8))
    return int(bblk), int(vmem_limit)


# ------------------------------- fused kernel --------------------------------

def _fused_kernel(om_ref, tm_ref, tgt_ref, lwm_ref, sel_ref, scale_ref,
                  w_ref, loss_ref, *, num_classes, num_channels, bblk, pixel_weight):
    C, B = num_channels, bblk
    HW = tgt_ref.shape[2]
    S = sel_ref.shape[1]

    # ---- per-pixel weight: first-max argmax over classes on full-width slabs ----
    best_val = om_ref[0]                                   # (B, HW)
    best_idx = jnp.zeros(best_val.shape, dtype=jnp.int32)
    for c in range(1, num_classes):                        # C_cls is small: static unroll
        v = om_ref[c]
        gt = v > best_val                                  # strict '>': first-max, like torch.argmax
        best_val = jnp.where(gt, v, best_val)
        best_idx = jnp.where(gt, jnp.int32(c), best_idx)
    eq = best_idx == tm_ref[...]                           # (B, HW)
    w_ref[...] = jnp.where(eq, jnp.float32(1.0), jnp.float32(pixel_weight))
    neq_bf16 = jnp.where(eq, 0.0, 1.0).astype(jnp.bfloat16)   # exact 0/1 in bf16

    # ---- nearest resize of ALL layers: bf16 MXU matmuls against 0/1 selection ----
    sel = sel_ref[...]                                     # (HW, S) bf16, exact 0/1
    tgt = tgt_ref[...].reshape(C * B, HW)                  # free reshape (B % 8 == 0)
    t_hi = tgt.astype(jnp.bfloat16)
    t_lo = (tgt - t_hi.astype(jnp.float32)).astype(jnp.bfloat16)
    t_res = (jnp.dot(t_hi, sel, preferred_element_type=jnp.float32) +
             jnp.dot(t_lo, sel, preferred_element_type=jnp.float32))      # (C*B, S)
    neq_res = jnp.dot(neq_bf16, sel, preferred_element_type=jnp.float32)  # (B, S), exact
    w_res = 1.0 + jnp.float32(pixel_weight - 1.0) * neq_res

    # ---- fused weighted L1 across all layers (scale row: 1/(N*C*s_l), 0 on pads) ----
    ad = jnp.abs(lwm_ref[...].reshape(C * B, S) - t_res)   # (C*B, S)
    d = ad[0:B, :]
    for c in range(1, C):                                  # sum over channels: aligned slabs
        d = d + ad[c * B:(c + 1) * B, :]                   # (B, S)
    part = jnp.sum(d * w_res * scale_ref[...])
    loss_ref[...] = jnp.full(loss_ref.shape, part, dtype=loss_ref.dtype)


# ---------------------------------- wrapper -----------------------------------

def lwm_int_layers_l1_loss(target, output_mask, target_mask, lwm_op,
                           pixel_weight=PIXEL_WEIGHT):
    """Pallas port of LWMIntLayersL1Loss.forward (nearest interpolation)."""
    N, C_img, H, W = target.shape
    C_cls = output_mask.shape[1]
    HW = H * W
    layer_shapes = [(int(x.shape[2]), int(x.shape[3])) for x in lwm_op]
    layer_sizes = [h * w for (h, w) in layer_shapes]
    seg_sizes = [_round_up(s, 128) for s in layer_sizes]   # 128-lane-padded segments
    S = int(sum(seg_sizes))

    B_blk, vmem_limit = _pick_block_and_vmem(N, C_img, C_cls, HW, S)
    N_pad = _round_up(N, B_blk)
    G = N_pad // B_blk

    def pad_batch(x, axis):
        pad = N_pad - N
        if pad == 0:
            return x
        widths = [(0, 0)] * x.ndim
        widths[axis] = (0, pad)
        return jnp.pad(x, widths)

    # Channel-major, lane-dense views; padded batch rows are zero and contribute
    # nothing to the loss (|0-0| = 0), padded weight rows are sliced off below.
    om_cm = pad_batch(jnp.transpose(
        output_mask.reshape(N, C_cls, HW).astype(jnp.float32), (1, 0, 2)), axis=1)
    tm2 = pad_batch(target_mask.reshape(N, HW).astype(jnp.int32), axis=0)
    tgt_cm = pad_batch(jnp.transpose(
        target.reshape(N, C_img, HW).astype(jnp.float32), (1, 0, 2)), axis=1)

    lwm_segs = []
    for x, s, sp in zip(lwm_op, layer_sizes, seg_sizes):
        xr = jnp.transpose(x.reshape(N, C_img, s).astype(jnp.float32), (1, 0, 2))
        xr = pad_batch(xr, axis=1)
        if sp > s:
            xr = jnp.pad(xr, ((0, 0), (0, 0), (0, sp - s)))
        lwm_segs.append(xr)
    lwm_slab = jnp.concatenate(lwm_segs, axis=2)            # (C_img, N_pad, S)

    sel_np, scale_np = _selection_and_scale(H, W, layer_shapes, layer_sizes,
                                            seg_sizes, N, C_img)
    sel = jnp.asarray(sel_np, dtype=jnp.bfloat16)            # 0/1: exact in bf16
    scale = jnp.asarray(scale_np, dtype=jnp.float32)

    kernel = functools.partial(
        _fused_kernel,
        num_classes=C_cls, num_channels=C_img, bblk=B_blk,
        pixel_weight=float(pixel_weight))

    in_specs = [
        pl.BlockSpec((C_cls, B_blk, HW), lambda i: (0, i, 0)),   # output_mask (chan-major)
        pl.BlockSpec((B_blk, HW), lambda i: (i, 0)),             # target_mask
        pl.BlockSpec((C_img, B_blk, HW), lambda i: (0, i, 0)),   # target (chan-major)
        pl.BlockSpec((C_img, B_blk, S), lambda i: (0, i, 0)),    # lwm slab (chan-major)
        pl.BlockSpec((HW, S), lambda i: (0, 0)),                 # selection matrix (const)
        pl.BlockSpec((1, S), lambda i: (0, 0)),                  # folded scale row (const)
    ]
    out_specs = (
        pl.BlockSpec((B_blk, HW), lambda i: (i, 0)),             # per-pixel weight
        pl.BlockSpec((1, 8, 128), lambda i: (i, 0, 0)),          # per-block loss partial
    )
    out_shape = (
        jax.ShapeDtypeStruct((N_pad, HW), jnp.float32),
        jax.ShapeDtypeStruct((G, 8, 128), jnp.float32),
    )

    weight_flat, loss_parts = pl.pallas_call(
        kernel,
        out_shape=out_shape,
        grid_spec=pltpu.PrefetchScalarGridSpec(
            num_scalar_prefetch=0,
            grid=(G,),
            in_specs=in_specs,
            out_specs=out_specs,
        ),
        compiler_params=pltpu.CompilerParams(
            dimension_semantics=("parallel",),       # shard batch blocks across TCs
            vmem_limit_bytes=vmem_limit,
        ),
    )(om_cm, tm2, tgt_cm, lwm_slab, sel, scale)

    loss = jnp.sum(loss_parts[:, 0, 0])
    weight = weight_flat[:N].reshape(N, 1, H, W)
    return loss, weight


# ------------------------------ numpy reference -------------------------------

def _reference_numpy(target, output_mask, target_mask, lwm_op, pixel_weight=PIXEL_WEIGHT):
    op_label = np.argmax(output_mask, axis=1)[:, None]                  # (N,1,H,W)
    weight = np.where(op_label == target_mask[:, None], 1.0, pixel_weight).astype(np.float32)
    loss = 0.0
    for lwm in lwm_op:
        h, w = lwm.shape[2], lwm.shape[3]
        hi = _nearest_indices(target.shape[2], h)
        wi = _nearest_indices(target.shape[3], w)
        t_r = target[:, :, hi][:, :, :, wi]
        w_r = weight[:, :, hi][:, :, :, wi]
        loss += float((np.abs(lwm - t_r) * w_r).mean())
    return loss, weight


if __name__ == "__main__":
    key = jax.random.PRNGKey(0)
    k1, k2, k3, k4, k5 = jax.random.split(key, 5)

    N, C_img, C_cls, H, W = 2, 3, 4, 16, 16
    target = jax.random.normal(k1, (N, C_img, H, W), dtype=jnp.float32)
    output_mask = jax.random.normal(k2, (N, C_cls, H, W), dtype=jnp.float32)
    target_mask = jax.random.randint(k3, (N, H, W), 0, C_cls, dtype=jnp.int32)
    lwm_op = [
        jax.random.normal(k4, (N, C_img, 8, 8), dtype=jnp.float32),
        jax.random.normal(k5, (N, C_img, 4, 4), dtype=jnp.float32),
    ]

    loss, weight = lwm_int_layers_l1_loss(target, output_mask, target_mask, lwm_op)
    loss = jax.block_until_ready(loss)
    weight = jax.block_until_ready(weight)

    ref_loss, ref_weight = _reference_numpy(
        np.asarray(target), np.asarray(output_mask),
        np.asarray(target_mask), [np.asarray(x) for x in lwm_op])

    assert np.allclose(np.asarray(weight), ref_weight), "weight mismatch"
    assert np.allclose(float(loss), ref_loss, rtol=1e-4, atol=1e-4), \
        f"loss mismatch: {float(loss)} vs {ref_loss}"
    print("KERNEL_OK")
</pallas_src>

<mosaic_0001>
module attributes {stable_mosaic.version = 11 : i64} {
  func.func @_fused_kernel(%arg0: i32, %arg1: memref<4x8x256xf32, #tpu.memory_space<vmem>>, %arg2: memref<8x256xi32, #tpu.memory_space<vmem>>, %arg3: memref<3x8x256xf32, #tpu.memory_space<vmem>>, %arg4: memref<3x8x256xf32, #tpu.memory_space<vmem>>, %arg5: memref<256x256xbf16, #tpu.memory_space<vmem>>, %arg6: memref<1x256xf32, #tpu.memory_space<vmem>>, %arg7: memref<8x256xf32, #tpu.memory_space<vmem>>, %arg8: memref<1x8x128xf32, #tpu.memory_space<vmem>>) attributes {dimension_semantics = [#tpu.dimension_semantics<parallel>], iteration_bounds = array<i64: 1>, scalar_prefetch = 0 : i64, scratch_operands = 0 : i64, tpu.core_type = #tpu.core_type<tc>, window_params = [{transform_indices = @transform_0, window_bounds = array<i64: 4, 8, 256>}, {transform_indices = @transform_1, window_bounds = array<i64: 8, 256>}, {transform_indices = @transform_2, window_bounds = array<i64: 3, 8, 256>}, {transform_indices = @transform_3, window_bounds = array<i64: 3, 8, 256>}, {pipeline_mode = #tpu.pipeline_mode<synchronous>, transform_indices = @transform_4, window_bounds = array<i64: 256, 256>}, {pipeline_mode = #tpu.pipeline_mode<synchronous>, transform_indices = @transform_5, window_bounds = array<i64: 1, 256>}, {transform_indices = @transform_6, window_bounds = array<i64: 8, 256>}, {transform_indices = @transform_7, window_bounds = array<i64: 1, 8, 128>}]} {
    %c0 = arith.constant 0 : index
    %c0_0 = arith.constant 0 : index
    %c0_1 = arith.constant 0 : index
    %0 = vector.load %arg1[%c0, %c0_0, %c0_1] : memref<4x8x256xf32, #tpu.memory_space<vmem>>, vector<1x8x256xf32>
    %1 = vector.shape_cast %0 : vector<1x8x256xf32> to vector<8x256xf32>
    %c0_i32 = arith.constant 0 : i32
    %2 = vector.broadcast %c0_i32 : i32 to vector<8x256xi32>
    %c1 = arith.constant 1 : index
    %c0_2 = arith.constant 0 : index
    %c0_3 = arith.constant 0 : index
    %3 = vector.load %arg1[%c1, %c0_2, %c0_3] : memref<4x8x256xf32, #tpu.memory_space<vmem>>, vector<1x8x256xf32>
    %4 = vector.shape_cast %3 : vector<1x8x256xf32> to vector<8x256xf32>
    %5 = arith.cmpf ogt, %4, %1 : vector<8x256xf32>
    %6 = arith.select %5, %4, %1 : vector<8x256xi1>, vector<8x256xf32>
    %c1_i32 = arith.constant 1 : i32
    %7 = vector.broadcast %c1_i32 : i32 to vector<8x256xi32>
    %8 = arith.select %5, %7, %2 : vector<8x256xi1>, vector<8x256xi32>
    %c2 = arith.constant 2 : index
    %c0_4 = arith.constant 0 : index
    %c0_5 = arith.constant 0 : index
    %9 = vector.load %arg1[%c2, %c0_4, %c0_5] : memref<4x8x256xf32, #tpu.memory_space<vmem>>, vector<1x8x256xf32>
    %10 = vector.shape_cast %9 : vector<1x8x256xf32> to vector<8x256xf32>
    %11 = arith.cmpf ogt, %10, %6 : vector<8x256xf32>
    %12 = arith.select %11, %10, %6 : vector<8x256xi1>, vector<8x256xf32>
    %c2_i32 = arith.constant 2 : i32
    %13 = vector.broadcast %c2_i32 : i32 to vector<8x256xi32>
    %14 = arith.select %11, %13, %8 : vector<8x256xi1>, vector<8x256xi32>
    %c3 = arith.constant 3 : index
    %c0_6 = arith.constant 0 : index
    %c0_7 = arith.constant 0 : index
    %15 = vector.load %arg1[%c3, %c0_6, %c0_7] : memref<4x8x256xf32, #tpu.memory_space<vmem>>, vector<1x8x256xf32>
    %16 = vector.shape_cast %15 : vector<1x8x256xf32> to vector<8x256xf32>
    %17 = arith.cmpf ogt, %16, %12 : vector<8x256xf32>
    %c3_i32 = arith.constant 3 : i32
    %18 = vector.broadcast %c3_i32 : i32 to vector<8x256xi32>
    %19 = arith.select %17, %18, %14 : vector<8x256xi1>, vector<8x256xi32>
    %c0_8 = arith.constant 0 : index
    %c0_9 = arith.constant 0 : index
    %20 = vector.load %arg2[%c0_8, %c0_9] : memref<8x256xi32, #tpu.memory_space<vmem>>, vector<8x256xi32>
    %21 = arith.cmpi eq, %19, %20 : vector<8x256xi32>
    %cst = arith.constant 1.000000e+00 : f32
    %cst_10 = arith.constant 2.000000e+00 : f32
    %22 = vector.broadcast %cst : f32 to vector<8x256xf32>
    %23 = vector.broadcast %cst_10 : f32 to vector<8x256xf32>
    %24 = arith.select %21, %22, %23 : vector<8x256xi1>, vector<8x256xf32>
    %c0_11 = arith.constant 0 : index
    %c0_12 = arith.constant 0 : index
    %25 = vector.load %arg7[%c0_11, %c0_12] : memref<8x256xf32, #tpu.memory_space<vmem>>, vector<8x256xf32>
    tpu.vector_store %arg7[%c0_11, %c0_12], %24 {strides = array<i32>} : memref<8x256xf32, #tpu.memory_space<vmem>>, vector<8x256xf32>,
    %cst_13 = arith.constant 0.000000e+00 : f32
    %cst_14 = arith.constant 1.000000e+00 : f32
    %26 = vector.broadcast %cst_13 : f32 to vector<8x256xf32>
    %27 = vector.broadcast %cst_14 : f32 to vector<8x256xf32>
    %28 = arith.select %21, %26, %27 : vector<8x256xi1>, vector<8x256xf32>
    %29 = arith.truncf %28 : vector<8x256xf32> to vector<8x256xbf16>
    %c0_15 = arith.constant 0 : index
    %c0_16 = arith.constant 0 : index
    %30 = vector.load %arg5[%c0_15, %c0_16] : memref<256x256xbf16, #tpu.memory_space<vmem>>, vector<256x256xbf16>
    %c0_17 = arith.constant 0 : index
    %c0_18 = arith.constant 0 : index
    %c0_19 = arith.constant 0 : index
    %31 = vector.load %arg3[%c0_17, %c0_18, %c0_19] : memref<3x8x256xf32, #tpu.memory_space<vmem>>, vector<3x8x256xf32>
    %32 = vector.shape_cast %31 : vector<3x8x256xf32> to vector<24x256xf32>
    %33 = arith.truncf %32 : vector<24x256xf32> to vector<24x256xbf16>
    %34 = arith.extf %33 : vector<24x256xbf16> to vector<24x256xf32>
    %35 = arith.subf %32, %34 : vector<24x256xf32>
    %36 = arith.truncf %35 : vector<24x256xf32> to vector<24x256xbf16>
    %cst_20 = arith.constant dense<0.000000e+00> : vector<24x256xf32>
    %37 = tpu.matmul %33, %30, %cst_20 {dimension_numbers = #tpu.dot_dimension_numbers<[1], [0], [0], [1], [0, 0, 1, 1], [], []>} : vector<24x256xbf16>, vector<256x256xbf16>, vector<24x256xf32> -> vector<24x256xf32>
    %cst_21 = arith.constant dense<0.000000e+00> : vector<24x256xf32>
    %38 = tpu.matmul %36, %30, %cst_21 {dimension_numbers = #tpu.dot_dimension_numbers<[1], [0], [0], [1], [0, 0, 1, 1], [], []>} : vector<24x256xbf16>, vector<256x256xbf16>, vector<24x256xf32> -> vector<24x256xf32>
    %39 = arith.addf %37, %38 : vector<24x256xf32>
    %cst_22 = arith.constant dense<0.000000e+00> : vector<8x256xf32>
    %40 = tpu.matmul %29, %30, %cst_22 {dimension_numbers = #tpu.dot_dimension_numbers<[1], [0], [0], [1], [0, 0, 1, 1], [], []>} : vector<8x256xbf16>, vector<256x256xbf16>, vector<8x256xf32> -> vector<8x256xf32>
    %cst_23 = arith.constant 1.000000e+00 : f32
    %41 = vector.broadcast %cst_23 : f32 to vector<8x256xf32>
    %42 = arith.mulf %41, %40 : vector<8x256xf32>
    %cst_24 = arith.constant 1.000000e+00 : f32
    %43 = vector.broadcast %cst_24 : f32 to vector<8x256xf32>
    %44 = arith.addf %43, %42 : vector<8x256xf32>
    %c0_25 = arith.constant 0 : index
    %c0_26 = arith.constant 0 : index
    %c0_27 = arith.constant 0 : index
    %45 = vector.load %arg4[%c0_25, %c0_26, %c0_27] : memref<3x8x256xf32, #tpu.memory_space<vmem>>, vector<3x8x256xf32>
    %46 = vector.shape_cast %45 : vector<3x8x256xf32> to vector<24x256xf32>
    %47 = arith.subf %46, %39 : vector<24x256xf32>
    %48 = math.absf %47 : vector<24x256xf32>
    %49 = vector.extract_strided_slice %48 {offsets = [0, 0], sizes = [8, 256], strides = [1, 1]} : vector<24x256xf32> to vector<8x256xf32>
    %50 = vector.extract_strided_slice %48 {offsets = [8, 0], sizes = [8, 256], strides = [1, 1]} : vector<24x256xf32> to vector<8x256xf32>
    %51 = arith.addf %49, %50 : vector<8x256xf32>
    %52 = vector.extract_strided_slice %48 {offsets = [16, 0], sizes = [8, 256], strides = [1, 1]} : vector<24x256xf32> to vector<8x256xf32>
    %53 = arith.addf %51, %52 : vector<8x256xf32>
    %54 = arith.mulf %53, %44 : vector<8x256xf32>
    %c0_28 = arith.constant 0 : index
    %c0_29 = arith.constant 0 : index
    %55 = vector.load %arg6[%c0_28, %c0_29] : memref<1x256xf32, #tpu.memory_space<vmem>>, vector<1x256xf32>
    %56 = vector.broadcast %55 : vector<1x256xf32> to vector<8x256xf32>
    %57 = arith.mulf %54, %56 : vector<8x256xf32>
    %58 = vector.shape_cast %57 : vector<8x256xf32> to vector<1x8x256xf32>
    %cst_30 = arith.constant dense<0.000000e+00> : vector<1xf32>
    %59 = vector.multi_reduction <add>, %58, %cst_30 [1, 2] : vector<1x8x256xf32> to vector<1xf32>
    %60 = vector.shape_cast %59 : vector<1xf32> to vector<1x1x1xf32>
    %61 = vector.extract %60[0, 0, 0] : f32 from vector<1x1x1xf32>
    %62 = vector.broadcast %61 : f32 to vector<1x8x128xf32>
    %c0_31 = arith.constant 0 : index
    %c0_32 = arith.constant 0 : index
    %c0_33 = arith.constant 0 : index
    %63 = vector.load %arg8[%c0_31, %c0_32, %c0_33] : memref<1x8x128xf32, #tpu.memory_space<vmem>>, vector<1x8x128xf32>
    tpu.vector_store %arg8[%c0_31, %c0_32, %c0_33], %62 {strides = array<i32>} : memref<1x8x128xf32, #tpu.memory_space<vmem>>, vector<1x8x128xf32>,
    return
  }
  func.func @transform_0(%arg0: i32) -> (i32, i32, i32) {
    %c0_i32 = arith.constant 0 : i32
    %c0_i32_0 = arith.constant 0 : i32
    %c0_i32_1 = arith.constant 0 : i32
    return %c0_i32, %arg0, %c0_i32_0 : i32, i32, i32
  }
  func.func @transform_1(%arg0: i32) -> (i32, i32) {
    %c0_i32 = arith.constant 0 : i32
    %c0_i32_0 = arith.constant 0 : i32
    return %arg0, %c0_i32 : i32, i32
  }
  func.func @transform_2(%arg0: i32) -> (i32, i32, i32) {
    %c0_i32 = arith.constant 0 : i32
    %c0_i32_0 = arith.constant 0 : i32
    %c0_i32_1 = arith.constant 0 : i32
    return %c0_i32, %arg0, %c0_i32_0 : i32, i32, i32
  }
  func.func @transform_3(%arg0: i32) -> (i32, i32, i32) {
    %c0_i32 = arith.constant 0 : i32
    %c0_i32_0 = arith.constant 0 : i32
    %c0_i32_1 = arith.constant 0 : i32
    return %c0_i32, %arg0, %c0_i32_0 : i32, i32, i32
  }
  func.func @transform_4(%arg0: i32) -> (i32, i32) {
    %c0_i32 = arith.constant 0 : i32
    %c0_i32_0 = arith.constant 0 : i32
    %c0_i32_1 = arith.constant 0 : i32
    return %c0_i32, %c0_i32_0 : i32, i32
  }
  func.func @transform_5(%arg0: i32) -> (i32, i32) {
    %c0_i32 = arith.constant 0 : i32
    %c0_i32_0 = arith.constant 0 : i32
    %c0_i32_1 = arith.constant 0 : i32
    return %c0_i32, %c0_i32_0 : i32, i32
  }
  func.func @transform_6(%arg0: i32) -> (i32, i32) {
    %c0_i32 = arith.constant 0 : i32
    %c0_i32_0 = arith.constant 0 : i32
    return %arg0, %c0_i32 : i32, i32
  }
  func.func @transform_7(%arg0: i32) -> (i32, i32, i32) {
    %c0_i32 = arith.constant 0 : i32
    %c0_i32_0 = arith.constant 0 : i32
    %c0_i32_1 = arith.constant 0 : i32
    return %arg0, %c0_i32, %c0_i32_0 : i32, i32, i32
  }
}

</mosaic_0001>

<llo_original>
// kernel: tpu_custom_call.1
$region0: #{tpu_custom_call.1}
  #allocation0 [shape = 'u32[]', space=smem, size = 0x4, offset = 0x4, fixed_abs, tag = 'smem constant byte address 0x4 - core index']
  #allocation1 [shape = 'u32[144,128]{1,0:T(1,128)}', space=vmem, size = 0x12000, scoped, tag = 'internal scratch']
  %s0 = inlined_call_operand.hbm [shape: f32[4,8,256], index: 0, kind: input, shape index: {}]
  %s1 = inlined_call_operand.hbm [shape: s32[8,256], index: 1, kind: input, shape index: {}]
  %s2 = inlined_call_operand.hbm [shape: f32[3,8,256], index: 2, kind: input, shape index: {}]
  %s3 = inlined_call_operand.hbm [shape: f32[3,8,256], index: 3, kind: input, shape index: {}]
  %s4 = inlined_call_operand.hbm [shape: bf16[256,256], index: 4, kind: input, shape index: {}]
  %s5 = inlined_call_operand.vmem [shape: f32[1,256], index: 5, kind: input, shape index: {}]
  %s6 = inlined_call_operand.hbm [shape: f32[8,256], index: 6, kind: output, shape index: {0}]
  %s7 = inlined_call_operand.hbm [shape: f32[1,8,128], index: 7, kind: output, shape index: {1}]
  %8 = xla_tuple %s6, %s7
  %s9 = sld [smem:[#allocation0]]
  $region62: #{tpu_custom_call.1} parent=0
    _
  %s11 = ssub.s32 1, %s9
  %s12 = scalar_select 0, %s11, %s9
  $region1: #{tpu_custom_call.1} parent=0
    #allocation2 [shape = 'u8[32768]{0}', space=vmem, size = 0x8000, scoped, tag = 'input window, operand 0, single buffered']
    #allocation3 [shape = 's32[1]{0}', space=sflag, size = 0x4, scoped, tag = 'scoped memory for tpu_custom_call.1']
    #allocation4 [shape = 's32[1]{0}', space=sflag, size = 0x4, scoped, tag = 'scoped memory for tpu_custom_call.1']
    #allocation5 [shape = 'u8[8192]{0}', space=vmem, size = 0x2000, scoped, tag = 'input window, operand 1, single buffered']
    #allocation6 [shape = 's32[1]{0}', space=sflag, size = 0x4, scoped, tag = 'scoped memory for tpu_custom_call.1']
    #allocation7 [shape = 'u8[24576]{0}', space=vmem, size = 0x6000, scoped, tag = 'input window, operand 2, single buffered']
    #allocation8 [shape = 'u8[24576]{0}', space=vmem, size = 0x6000, scoped, tag = 'input window, operand 3, single buffered']
    #allocation9 [shape = 's32[1]{0}', space=sflag, size = 0x4, scoped, tag = 'scoped memory for tpu_custom_call.1']
    #allocation10 [shape = 'u8[131072]{0}', space=vmem, size = 0x20000, scoped, tag = 'input window, operand 4, single buffered']
    #allocation11 [shape = 'u8[8192]{0}', space=vmem, size = 0x2000, scoped, tag = 'output window, operand 0, single buffered']
    #allocation12 [shape = 'u8[4096]{0}', space=vmem, size = 0x1000, scoped, tag = 'output window, operand 1, single buffered']
    #allocation13 [shape = 's32[1]{0}', space=sflag, size = 0x4, scoped, tag = 'scoped memory for tpu_custom_call.1']
    %13 = vsyncpa [#allocation3], 0
    %14 = vsyncpa [#allocation6], 0
    %15 = vsyncpa [#allocation9], 0
    %16 = vsyncpa [#allocation4], 0
    %17 = vsyncpa [#allocation13], 0
    // Predicated region
    $region2: #{tpu_custom_call.1} parent=1 // pred_check
      _
    $region3: #{tpu_custom_call.1} parent=1 // pred_check_branch
      %19 = sbr.rel (0) target = $region5
    $region4: #{tpu_custom_call.1} parent=1 // pred_region
      %s21 = ssub.s32 1024, 1024
      %22 = vsyncadd [#allocation3], %s21
      %s23 = sshll.u32 [#allocation2], 4
      %s24 = int_to_ptr.vmem [resolvable:$true] %s23
      %29 = dma.hbm_to_vmem [thread:$0]  %s0, 1024, %s24, [#allocation3], 256, 256, 16
    $region5: #{tpu_custom_call.1} parent=1 // pred_fallthru
      _
    // Predicated region
    $region6: #{tpu_custom_call.1} parent=1 // pred_check
      _
    $region7: #{tpu_custom_call.1} parent=1 // pred_check_branch
      %31 = sbr.rel (0) target = $region9
    $region8: #{tpu_custom_call.1} parent=1 // pred_region
      %s33 = ssub.s32 256, 256
      %34 = vsyncadd [#allocation6], %s33
      %s36 = sshll.u32 [#allocation5], 4
      %s37 = int_to_ptr.vmem [resolvable:$true] %s36
      %39 = dma.hbm_to_vmem [thread:$0]  %s1, 256, %s37, [#allocation6]
    $region9: #{tpu_custom_call.1} parent=1 // pred_fallthru
      _
    // Predicated region
    $region10: #{tpu_custom_call.1} parent=1 // pred_check
      _
    $region11: #{tpu_custom_call.1} parent=1 // pred_check_branch
      %41 = sbr.rel (0) target = $region13
    $region12: #{tpu_custom_call.1} parent=1 // pred_region
      %s43 = ssub.s32 768, 768
      %44 = vsyncadd [#allocation6], %s43
      %s45 = sshll.u32 [#allocation7], 4
      %s46 = int_to_ptr.vmem [resolvable:$true] %s45
      %51 = dma.hbm_to_vmem [thread:$0]  %s2, 768, %s46, [#allocation6], 256, 256, 16
    $region13: #{tpu_custom_call.1} parent=1 // pred_fallthru
      _
    // Predicated region
    $region14: #{tpu_custom_call.1} parent=1 // pred_check
      _
    $region15: #{tpu_custom_call.1} parent=1 // pred_check_branch
      %53 = sbr.rel (0) target = $region17
    $region16: #{tpu_custom_call.1} parent=1 // pred_region
      %s55 = ssub.s32 768, 768
      %56 = vsyncadd [#allocation9], %s55
      %s57 = sshll.u32 [#allocation8], 4
      %s58 = int_to_ptr.vmem [resolvable:$true] %s57
      %63 = dma.hbm_to_vmem [thread:$0]  %s3, 768, %s58, [#allocation9], 256, 256, 16
    $region17: #{tpu_custom_call.1} parent=1 // pred_fallthru
      _
    // Predicated region
    $region18: #{tpu_custom_call.1} parent=1 // pred_check
      _
    $region19: #{tpu_custom_call.1} parent=1 // pred_check_branch
      %65 = sbr.rel (0) target = $region21
    $region20: #{tpu_custom_call.1} parent=1 // pred_region
      %s67 = ssub.s32 4096, 4096
      %68 = vsyncadd [#allocation9], %s67
      %s69 = sshll.u32 [#allocation10], 4
      %s70 = int_to_ptr.vmem [resolvable:$true] %s69
      %75 = dma.hbm_to_vmem [thread:$0]  %s4, 4096, %s70, [#allocation9], 128, 128, 8
    $region21: #{tpu_custom_call.1} parent=1 // pred_fallthru
      _
    // Predicated region
    $region22: #{tpu_custom_call.1} parent=1 // pred_check
      _
    $region23: #{tpu_custom_call.1} parent=1 // pred_check_branch
      %77 = sbr.rel (0) target = $region25
    $region24: #{tpu_custom_call.1} parent=1 // pred_region
      _
    $region25: #{tpu_custom_call.1} parent=1 // pred_fallthru
      _
    // Predicated region
    $region26: #{tpu_custom_call.1} parent=1 // pred_check
      _
    $region27: #{tpu_custom_call.1} parent=1 // pred_check_branch
      %79 = sbr.rel (0) target = $region29
    $region28: #{tpu_custom_call.1} parent=1 // pred_region
      %80 = dma.done [#allocation3], 1024
    $region29: #{tpu_custom_call.1} parent=1 // pred_fallthru
      _
    // Predicated region
    $region30: #{tpu_custom_call.1} parent=1 // pred_check
      _
    $region31: #{tpu_custom_call.1} parent=1 // pred_check_branch
      %82 = sbr.rel (0) target = $region33
    $region32: #{tpu_custom_call.1} parent=1 // pred_region
      %83 = dma.done [#allocation6], 256
    $region33: #{tpu_custom_call.1} parent=1 // pred_fallthru
      _
    // Predicated region
    $region34: #{tpu_custom_call.1} parent=1 // pred_check
      _
    $region35: #{tpu_custom_call.1} parent=1 // pred_check_branch
      %85 = sbr.rel (0) target = $region37
    $region36: #{tpu_custom_call.1} parent=1 // pred_region
      %86 = dma.done [#allocation6], 768
    $region37: #{tpu_custom_call.1} parent=1 // pred_fallthru
      _
    // Predicated region
    $region38: #{tpu_custom_call.1} parent=1 // pred_check
      _
    $region39: #{tpu_custom_call.1} parent=1 // pred_check_branch
      %88 = sbr.rel (0) target = $region41
    $region40: #{tpu_custom_call.1} parent=1 // pred_region
      %89 = dma.done [#allocation9], 768
    $region41: #{tpu_custom_call.1} parent=1 // pred_fallthru
      _
    // Predicated region
    $region42: #{tpu_custom_call.1} parent=1 // pred_check
      _
    $region43: #{tpu_custom_call.1} parent=1 // pred_check_branch
      %91 = sbr.rel (0) target = $region45
    $region44: #{tpu_custom_call.1} parent=1 // pred_region
      %92 = dma.done [#allocation9], 4096
    $region45: #{tpu_custom_call.1} parent=1 // pred_fallthru
      _
    %v93 = vld [vmem:[#allocation2] sm:$0xff]
    %v94 = vld [vmem:[#allocation2 + $0x8] sm:$0xff]
    %s95 = scalar_lea.vmem [#allocation2], 16
    %v96 = vld [vmem:[%s95] sm:$0xff]
    %v97 = vld [vmem:[%s95 + $0x8] sm:$0xff]
    %vm98 = vcmp.gt.f32.partialorder %v96, %v93
    %vm99 = vcmp.gt.f32.partialorder %v97, %v94
    %v100 = vsel %vm98, %v96, %v93
    %v101 = vsel %vm99, %v97, %v94
    %v102 = vsel %vm98, 1, 0
    %v103 = vsel %vm99, 1, 0
    %s104 = scalar_lea.vmem [#allocation2], 32
    %v105 = vld [vmem:[%s104] sm:$0xff]
    %v106 = vld [vmem:[%s104 + $0x8] sm:$0xff]
    %vm107 = vcmp.gt.f32.partialorder %v105, %v100
    %vm108 = vcmp.gt.f32.partialorder %v106, %v101
    %v109 = vsel %vm107, %v105, %v100
    %v110 = vsel %vm108, %v106, %v101
    %v111 = vsel %vm107, 2, %v102
    %v112 = vsel %vm108, 2, %v103
    %s113 = scalar_lea.vmem [#allocation2], 48
    %v114 = vld [vmem:[%s113] sm:$0xff]
    %v115 = vld [vmem:[%s113 + $0x8] sm:$0xff]
    %vm116 = vcmp.gt.f32.partialorder %v114, %v109
    %vm117 = vcmp.gt.f32.partialorder %v115, %v110
    %v118 = vsel %vm116, 3, %v111
    %v119 = vsel %vm117, 3, %v112
    %v120 = vld [vmem:[#allocation5] sm:$0xff]
    %v121 = vld [vmem:[#allocation5 + $0x8] sm:$0xff]
    %vm122 = vcmp.eq.s32.totalorder %v118, %v120
    %vm123 = vcmp.eq.s32.totalorder %v119, %v121
    %v124 = vsel %vm122, 1.0, 2.0
    %v125 = vsel %vm123, 1.0, 2.0
    %126 = vst [vmem:[#allocation11] sm:$0xff] %v124
    %127 = vst [vmem:[#allocation11 + $0x8] sm:$0xff] %v125
    %v128 = vsel %vm122, 0.0, 1.0
    %v129 = vsel %vm123, 0.0, 1.0
    %v130 = vpack.c.bf16 %v128, %v128
    %v131 = vpack.c.bf16 %v129, %v129
    %v132 = vld [vmem:[#allocation10] sm:$0xff]
    %v133 = vld [vmem:[#allocation10 + $0x8] sm:$0xff]
    %v134 = vld [vmem:[#allocation10 + $0x10] sm:$0xff]
    %v135 = vld [vmem:[#allocation10 + $0x18] sm:$0xff]
    %v136 = vld [vmem:[#allocation10 + $0x20] sm:$0xff]
    %v137 = vld [vmem:[#allocation10 + $0x28] sm:$0xff]
    %v138 = vld [vmem:[#allocation10 + $0x30] sm:$0xff]
    %v139 = vld [vmem:[#allocation10 + $0x38] sm:$0xff]
    %v140 = vld [vmem:[#allocation10 + $0x40] sm:$0xff]
    %v141 = vld [vmem:[#allocation10 + $0x48] sm:$0xff]
    %v142 = vld [vmem:[#allocation10 + $0x50] sm:$0xff]
    %v143 = vld [vmem:[#allocation10 + $0x58] sm:$0xff]
    %v144 = vld [vmem:[#allocation10 + $0x60] sm:$0xff]
    %v145 = vld [vmem:[#allocation10 + $0x68] sm:$0xff]
    %v146 = vld [vmem:[#allocation10 + $0x70] sm:$0xff]
    %v147 = vld [vmem:[#allocation10 + $0x78] sm:$0xff]
    %v148 = vld [vmem:[#allocation10 + $0x80] sm:$0xff]
    %v149 = vld [vmem:[#allocation10 + $0x88] sm:$0xff]
    %v150 = vld [vmem:[#allocation10 + $0x90] sm:$0xff]
    %v151 = vld [vmem:[#allocation10 + $0x98] sm:$0xff]
    %v152 = vld [vmem:[#allocation10 + $0xa0] sm:$0xff]
    %v153 = vld [vmem:[#allocation10 + $0xa8] sm:$0xff]
    %v154 = vld [vmem:[#allocation10 + $0xb0] sm:$0xff]
    %v155 = vld [vmem:[#allocation10 + $0xb8] sm:$0xff]
    %v156 = vld [vmem:[#allocation10 + $0xc0] sm:$0xff]
    %v157 = vld [vmem:[#allocation10 + $0xc8] sm:$0xff]
    %v158 = vld [vmem:[#allocation10 + $0xd0] sm:$0xff]
    %v159 = vld [vmem:[#allocation10 + $0xd8] sm:$0xff]
    %v160 = vld [vmem:[#allocation10 + $0xe0] sm:$0xff]
    %v161 = vld [vmem:[#allocation10 + $0xe8] sm:$0xff]
    %v162 = vld [vmem:[#allocation10 + $0xf0] sm:$0xff]
    %v163 = vld [vmem:[#allocation10 + $0xf8] sm:$0xff]
    %v164 = vld [vmem:[#allocation7] sm:$0xff]
    %v165 = vld [vmem:[#allocation7 + $0x8] sm:$0xff]
    %v166 = vld [vmem:[#allocation7 + $0x10] sm:$0xff]
    %v167 = vld [vmem:[#allocation7 + $0x18] sm:$0xff]
    %v168 = vld [vmem:[#allocation7 + $0x20] sm:$0xff]
    %v169 = vld [vmem:[#allocation7 + $0x28] sm:$0xff]
    %v170 = vpack.c.bf16 %v166, %v164
    %v171 = vpack.c.bf16 %v167, %v165
    %v172 = vpack.c.bf16 %v168, %v168
    %v173 = vpack.c.bf16 %v169, %v169
    %v174 = vunpack.c.l.bf16 %v170
    %v175 = vunpack.c.l.bf16 %v171
    %v176 = vunpack.c.h.bf16 %v170
    %v177 = vunpack.c.h.bf16 %v171
    %v178 = vunpack.c.l.bf16 %v172
    %v179 = vunpack.c.l.bf16 %v173
    %v180 = vsub.f32 %v164, %v174
    %v181 = vsub.f32 %v165, %v175
    %v182 = vsub.f32 %v166, %v176
    %v183 = vsub.f32 %v167, %v177
    %v184 = vsub.f32 %v168, %v178
    %v185 = vsub.f32 %v169, %v179
    %v186 = vpack.c.bf16 %v182, %v180
    %v187 = vpack.c.bf16 %v183, %v181
    %v188 = vpack.c.bf16 %v184, %v184
    %v189 = vpack.c.bf16 %v185, %v185
    %v222 = vunpack.c.l.b16 %v132
    %v223 = vunpack.c.h.b16 %v132
    %v224 = vunpack.c.l.b16 %v133
    %v225 = vunpack.c.h.b16 %v133
    %v226 = vunpack.c.l.b16 %v134
    %v227 = vunpack.c.h.b16 %v134
    %v228 = vunpack.c.l.b16 %v135
    %v229 = vunpack.c.h.b16 %v135
    %v230 = vunpack.c.l.b16 %v136
    %v231 = vunpack.c.h.b16 %v136
    %v232 = vunpack.c.l.b16 %v137
    %v233 = vunpack.c.h.b16 %v137
    %v234 = vunpack.c.l.b16 %v138
    %v235 = vunpack.c.h.b16 %v138
    %v236 = vunpack.c.l.b16 %v139
    %v237 = vunpack.c.h.b16 %v139
    %v238 = vunpack.c.l.b16 %v140
    %v239 = vunpack.c.h.b16 %v140
    %v240 = vunpack.c.l.b16 %v141
    %v241 = vunpack.c.h.b16 %v141
    %v242 = vunpack.c.l.b16 %v142
    %v243 = vunpack.c.h.b16 %v142
    %v244 = vunpack.c.l.b16 %v143
    %v245 = vunpack.c.h.b16 %v143
    %v246 = vunpack.c.l.b16 %v144
    %v247 = vunpack.c.h.b16 %v144
    %v248 = vunpack.c.l.b16 %v145
    %v249 = vunpack.c.h.b16 %v145
    %v250 = vunpack.c.l.b16 %v146
    %v251 = vunpack.c.h.b16 %v146
    %v252 = vunpack.c.l.b16 %v147
    %v253 = vunpack.c.h.b16 %v147
    %v254 = vunpack.c.l.b16 %v148
    %v255 = vunpack.c.h.b16 %v148
    %v256 = vunpack.c.l.b16 %v149
    %v257 = vunpack.c.h.b16 %v149
    %v258 = vunpack.c.l.b16 %v150
    %v259 = vunpack.c.h.b16 %v150
    %v260 = vunpack.c.l.b16 %v151
    %v261 = vunpack.c.h.b16 %v151
    %v262 = vunpack.c.l.b16 %v152
    %v263 = vunpack.c.h.b16 %v152
    %v264 = vunpack.c.l.b16 %v153
    %v265 = vunpack.c.h.b16 %v153
    %v266 = vunpack.c.l.b16 %v154
    %v267 = vunpack.c.h.b16 %v154
    %v268 = vunpack.c.l.b16 %v155
    %v269 = vunpack.c.h.b16 %v155
    %v270 = vunpack.c.l.b16 %v156
    %v271 = vunpack.c.h.b16 %v156
    %v272 = vunpack.c.l.b16 %v157
    %v273 = vunpack.c.h.b16 %v157
    %v274 = vunpack.c.l.b16 %v158
    %v275 = vunpack.c.h.b16 %v158
    %v276 = vunpack.c.l.b16 %v159
    %v277 = vunpack.c.h.b16 %v159
    %v278 = vunpack.c.l.b16 %v160
    %v279 = vunpack.c.h.b16 %v160
    %v280 = vunpack.c.l.b16 %v161
    %v281 = vunpack.c.h.b16 %v161
    %v282 = vunpack.c.l.b16 %v162
    %v283 = vunpack.c.h.b16 %v162
    %v284 = vunpack.c.l.b16 %v163
    %v285 = vunpack.c.h.b16 %v163
    %v286 = vpack.c.b16 %v224, %v222
    %v287 = vpack.c.b16 %v225, %v223
    %v288 = vpack.c.b16 %v228, %v226
    %v289 = vpack.c.b16 %v229, %v227
    %v290 = vpack.c.b16 %v232, %v230
    %v291 = vpack.c.b16 %v233, %v231
    %v292 = vpack.c.b16 %v236, %v234
    %v293 = vpack.c.b16 %v237, %v235
    %v294 = vpack.c.b16 %v240, %v238
    %v295 = vpack.c.b16 %v241, %v239
    %v296 = vpack.c.b16 %v244, %v242
    %v297 = vpack.c.b16 %v245, %v243
    %v298 = vpack.c.b16 %v248, %v246
    %v299 = vpack.c.b16 %v249, %v247
    %v300 = vpack.c.b16 %v252, %v250
    %v301 = vpack.c.b16 %v253, %v251
    %v302 = vpack.c.b16 %v256, %v254
    %v303 = vpack.c.b16 %v257, %v255
    %v304 = vpack.c.b16 %v260, %v258
    %v305 = vpack.c.b16 %v261, %v259
    %v306 = vpack.c.b16 %v264, %v262
    %v307 = vpack.c.b16 %v265, %v263
    %v308 = vpack.c.b16 %v268, %v266
    %v309 = vpack.c.b16 %v269, %v267
    %v310 = vpack.c.b16 %v272, %v270
    %v311 = vpack.c.b16 %v273, %v271
    %v312 = vpack.c.b16 %v276, %v274
    %v313 = vpack.c.b16 %v277, %v275
    %v314 = vpack.c.b16 %v280, %v278
    %v315 = vpack.c.b16 %v281, %v279
    %v316 = vpack.c.b16 %v284, %v282
    %v317 = vpack.c.b16 %v285, %v283
    %350 = vmatprep.subr.bf16.mxu0 %v301
    %351 = vmatpush1.bf16.msra.mxu0 %v300
    %352 = vmatprep.subr.bf16.mxu0 %v299
    %353 = vmatpush1.bf16.msra.mxu0 %v298
    %354 = vmatprep.subr.bf16.mxu0 %v297
    %355 = vmatpush1.bf16.msra.mxu0 %v296
    %356 = vmatprep.subr.bf16.mxu0 %v295
    %357 = vmatpush1.bf16.msra.mxu0 %v294
    %358 = vmatprep.subr.bf16.mxu0 %v293
    %359 = vmatpush1.bf16.msra.mxu0 %v292
    %360 = vmatprep.subr.bf16.mxu0 %v291
    %361 = vmatpush1.bf16.msra.mxu0 %v290
    %362 = vmatprep.subr.bf16.mxu0 %v289
    %363 = vmatpush1.bf16.msra.mxu0 %v288
    %364 = vmatprep.subr.bf16.mxu0 %v287
    %365 = vmatpush1.bf16.msra.mxu0 %v286
    %366 = vmatprep.subr.bf16.mxu0 %v317
    %367 = vmatpush2.bf16.msra.mxu0 %v316
    %368 = vmatprep.subr.bf16.mxu0 %v315
    %369 = vmatpush2.bf16.msra.mxu0 %v314
    %370 = vmatprep.subr.bf16.mxu0 %v313
    %371 = vmatpush2.bf16.msra.mxu0 %v312
    %372 = vmatprep.subr.bf16.mxu0 %v311
    %373 = vmatpush2.bf16.msra.mxu0 %v310
    %374 = vmatprep.subr.bf16.mxu0 %v309
    %375 = vmatpush2.bf16.msra.mxu0 %v308
    %376 = vmatprep.subr.bf16.mxu0 %v307
    %377 = vmatpush2.bf16.msra.mxu0 %v306
    %378 = vmatprep.subr.bf16.mxu0 %v305
    %379 = vmatpush2.bf16.msra.mxu0 %v304
    %380 = vmatprep.subr.bf16.mxu0 %v303
    %381 = vmatpush2.bf16.msra.mxu0 %v302
    %382 = vmatprep.mubr.bf16.mxu0 %v187
    %383 = vmatmul.mubr.bf16.gmra.mxu0 %v186
    %v384 = vpop.f32.mrf.mxu0
    %v385 = vadd.f32 0.0, %v384
    %v386 = vpop.f32.mrf.mxu0
    %v387 = vadd.f32 0.0, %v386
    %v388 = vpop.f32.mrf.mxu0
    %v389 = vadd.f32 0.0, %v388
    %v390 = vpop.f32.mrf.mxu0
    %v391 = vadd.f32 0.0, %v390
    %392 = vmatprep.mubr.bf16.mxu0 %v189
    %393 = vmatmul.mubr.bf16.gmra.mxu0 %v188
    %v394 = vpop.f32.mrf.mxu0
    %v395 = vadd.f32 0.0, %v394
    %v396 = vpop.f32.mrf.mxu0
    %v397 = vadd.f32 0.0, %v396
    %v398 = vpop.f32.mrf.mxu0
    %v399 = vpop.f32.mrf.mxu0
    %400 = vdwg.mxu0
    %401 = vmatprep.subr.bf16.mxu0 %v301
    %402 = vmatpush1.bf16.msra.mxu0 %v300
    %403 = vmatprep.subr.bf16.mxu0 %v299
    %404 = vmatpush1.bf16.msra.mxu0 %v298
    %405 = vmatprep.subr.bf16.mxu0 %v297
    %406 = vmatpush1.bf16.msra.mxu0 %v296
    %407 = vmatprep.subr.bf16.mxu0 %v295
    %408 = vmatpush1.bf16.msra.mxu0 %v294
    %409 = vmatprep.subr.bf16.mxu0 %v293
    %410 = vmatpush1.bf16.msra.mxu0 %v292
    %411 = vmatprep.subr.bf16.mxu0 %v291
    %412 = vmatpush1.bf16.msra.mxu0 %v290
    %413 = vmatprep.subr.bf16.mxu0 %v289
    %414 = vmatpush1.bf16.msra.mxu0 %v288
    %415 = vmatprep.subr.bf16.mxu0 %v287
    %416 = vmatpush1.bf16.msra.mxu0 %v286
    %417 = vmatprep.subr.bf16.mxu0 %v317
    %418 = vmatpush2.bf16.msra.mxu0 %v316
    %419 = vmatprep.subr.bf16.mxu0 %v315
    %420 = vmatpush2.bf16.msra.mxu0 %v314
    %421 = vmatprep.subr.bf16.mxu0 %v313
    %422 = vmatpush2.bf16.msra.mxu0 %v312
    %423 = vmatprep.subr.bf16.mxu0 %v311
    %424 = vmatpush2.bf16.msra.mxu0 %v310
    %425 = vmatprep.subr.bf16.mxu0 %v309
    %426 = vmatpush2.bf16.msra.mxu0 %v308
    %427 = vmatprep.subr.bf16.mxu0 %v307
    %428 = vmatpush2.bf16.msra.mxu0 %v306
    %429 = vmatprep.subr.bf16.mxu0 %v305
    %430 = vmatpush2.bf16.msra.mxu0 %v304
    %431 = vmatprep.subr.bf16.mxu0 %v303
    %432 = vmatpush2.bf16.msra.mxu0 %v302
    %433 = vmatprep.mubr.bf16.mxu0 %v171
    %434 = vmatmul.mubr.bf16.gmra.mxu0 %v170
    %v435 = vpop.f32.mrf.mxu0
    %v436 = vadd.f32 %v385, %v435
    %v437 = vpop.f32.mrf.mxu0
    %v438 = vadd.f32 %v387, %v437
    %v439 = vpop.f32.mrf.mxu0
    %v440 = vadd.f32 %v389, %v439
    %v441 = vpop.f32.mrf.mxu0
    %v442 = vadd.f32 %v391, %v441
    %443 = vmatprep.mubr.bf16.mxu0 %v173
    %444 = vmatmul.mubr.bf16.gmra.mxu0 %v172
    %v445 = vpop.f32.mrf.mxu0
    %v446 = vadd.f32 %v395, %v445
    %v447 = vpop.f32.mrf.mxu0
    %v448 = vadd.f32 %v397, %v447
    %v449 = vpop.f32.mrf.mxu0
    %v450 = vpop.f32.mrf.mxu0
    %451 = vdwg.mxu0
    %452 = vmatprep.subr.bf16.mxu0 %v301
    %453 = vmatpush1.bf16.msra.mxu0 %v300
    %454 = vmatprep.subr.bf16.mxu0 %v299
    %455 = vmatpush1.bf16.msra.mxu0 %v298
    %456 = vmatprep.subr.bf16.mxu0 %v297
    %457 = vmatpush1.bf16.msra.mxu0 %v296
    %458 = vmatprep.subr.bf16.mxu0 %v295
    %459 = vmatpush1.bf16.msra.mxu0 %v294
    %460 = vmatprep.subr.bf16.mxu0 %v293
    %461 = vmatpush1.bf16.msra.mxu0 %v292
    %462 = vmatprep.subr.bf16.mxu0 %v291
    %463 = vmatpush1.bf16.msra.mxu0 %v290
    %464 = vmatprep.subr.bf16.mxu0 %v289
    %465 = vmatpush1.bf16.msra.mxu0 %v288
    %466 = vmatprep.subr.bf16.mxu0 %v287
    %467 = vmatpush1.bf16.msra.mxu0 %v286
    %468 = vmatprep.subr.bf16.mxu0 %v317
    %469 = vmatpush2.bf16.msra.mxu0 %v316
    %470 = vmatprep.subr.bf16.mxu0 %v315
    %471 = vmatpush2.bf16.msra.mxu0 %v314
    %472 = vmatprep.subr.bf16.mxu0 %v313
    %473 = vmatpush2.bf16.msra.mxu0 %v312
    %474 = vmatprep.subr.bf16.mxu0 %v311
    %475 = vmatpush2.bf16.msra.mxu0 %v310
    %476 = vmatprep.subr.bf16.mxu0 %v309
    %477 = vmatpush2.bf16.msra.mxu0 %v308
    %478 = vmatprep.subr.bf16.mxu0 %v307
    %479 = vmatpush2.bf16.msra.mxu0 %v306
    %480 = vmatprep.subr.bf16.mxu0 %v305
    %481 = vmatpush2.bf16.msra.mxu0 %v304
    %482 = vmatprep.subr.bf16.mxu0 %v303
    %483 = vmatpush2.bf16.msra.mxu0 %v302
    %484 = vmatprep.mubr.bf16.mxu0 %v131
    %485 = vmatmul.mubr.bf16.gmra.mxu0 %v130
    %v486 = vpop.f32.mrf.mxu0
    %v487 = vadd.f32 1.0, %v486
    %v488 = vpop.f32.mrf.mxu0
    %v489 = vadd.f32 1.0, %v488
    %v490 = vpop.f32.mrf.mxu0
    %v491 = vpop.f32.mrf.mxu0
    %492 = vdwg.mxu0
    %v493 = vld [vmem:[#allocation8] sm:$0xff]
    %v494 = vld [vmem:[#allocation8 + $0x8] sm:$0xff]
    %v495 = vld [vmem:[#allocation8 + $0x10] sm:$0xff]
    %v496 = vld [vmem:[#allocation8 + $0x18] sm:$0xff]
    %v497 = vld [vmem:[#allocation8 + $0x20] sm:$0xff]
    %v498 = vld [vmem:[#allocation8 + $0x28] sm:$0xff]
    %v499 = vsub.f32 %v493, %v436
    %v500 = vsub.f32 %v494, %v438
    %v501 = vsub.f32 %v495, %v440
    %v502 = vsub.f32 %v496, %v442
    %v503 = vsub.f32 %v497, %v446
    %v504 = vsub.f32 %v498, %v448
    %v505 = vand.u32 2147483647, %v499
    %v506 = vand.u32 2147483647, %v500
    %v507 = vand.u32 2147483647, %v501
    %v508 = vand.u32 2147483647, %v502
    %v509 = vand.u32 2147483647, %v503
    %v510 = vand.u32 2147483647, %v504
    %v511 = vadd.f32 %v505, %v507
    %v512 = vadd.f32 %v506, %v508
    %v513 = vadd.f32 %v511, %v509
    %v514 = vadd.f32 %v512, %v510
    %v515 = vmul.f32 %v513, %v487
    %v516 = vmul.f32 %v514, %v489
    %v517 = vld [vmem:[%s5] sm:$0x3]
    %v519 = vlaneseq
    %v520 = vshrl.u32 %v519, 7
    %v521 = vsub.s32 0, %v520
    %v522 = vrot.slane %v517, %v521
    %v523 = vlaneseq
    %v524 = vshrl.u32 %v523, 7
    %v525 = vsub.s32 1, %v524
    %v526 = vrot.slane %v517, %v525
    %v529 = vmul.f32 %v515, %v522
    %v530 = vmul.f32 %v516, %v526
    %v531 = vadd.f32 %v529, %v530
    %532 = vadd.xlane.f32.xlu0 %v531
    %v533 = vpop.xlane.xlu0 %532
    %v534 = vrot.slane %v533, 4
    %v535 = vadd.f32 %v533, %v534
    %v536 = vrot.slane %v535, 2
    %v537 = vadd.f32 %v535, %v536
    %v538 = vrot.slane %v537, 1
    %v539 = vadd.f32 %v537, %v538
    %s540 = vtos %v539
    %v541 = vstv %s540
    %542 = vst [vmem:[#allocation12] sm:$0xff] %v541
    // Predicated region
    $region46: #{tpu_custom_call.1} parent=1 // pred_check
      _
    $region47: #{tpu_custom_call.1} parent=1 // pred_check_branch
      %544 = sbr.rel (0) target = $region49
    $region48: #{tpu_custom_call.1} parent=1 // pred_region
      %s546 = ssub.s32 256, 256
      %547 = vsyncadd [#allocation4], %s546
      %s549 = sshll.u32 [#allocation11], 4
      %s550 = int_to_ptr.vmem [resolvable:$true] %s549
      %552 = dma.vmem_to_hbm [thread:$0]  %s550, 256, %s6, [#allocation4]
    $region49: #{tpu_custom_call.1} parent=1 // pred_fallthru
      _
    // Predicated region
    $region50: #{tpu_custom_call.1} parent=1 // pred_check
      _
    $region51: #{tpu_custom_call.1} parent=1 // pred_check_branch
      %554 = sbr.rel (0) target = $region53
    $region52: #{tpu_custom_call.1} parent=1 // pred_region
      %s556 = ssub.s32 128, 128
      %557 = vsyncadd [#allocation13], %s556
      %s559 = sshll.u32 [#allocation12], 4
      %s560 = int_to_ptr.vmem [resolvable:$true] %s559
      %562 = dma.vmem_to_hbm [thread:$0]  %s560, 128, %s7, [#allocation13]
    $region53: #{tpu_custom_call.1} parent=1 // pred_fallthru
      _
    // Predicated region
    $region54: #{tpu_custom_call.1} parent=1 // pred_check
      _
    $region55: #{tpu_custom_call.1} parent=1 // pred_check_branch
      %564 = sbr.rel (0) target = $region57
    $region56: #{tpu_custom_call.1} parent=1 // pred_region
      %565 = dma.done [#allocation4], 256
    $region57: #{tpu_custom_call.1} parent=1 // pred_fallthru
      _
    // Predicated region
    $region58: #{tpu_custom_call.1} parent=1 // pred_check
      _
    $region59: #{tpu_custom_call.1} parent=1 // pred_check_branch
      %567 = sbr.rel (0) target = $region61
    $region60: #{tpu_custom_call.1} parent=1 // pred_region
      %568 = dma.done [#allocation13], 128
    $region61: #{tpu_custom_call.1} parent=1 // pred_fallthru
      _
    %569 = vsyncpa [#allocation3], 1
    %570 = vsyncpa [#allocation6], 1
    %571 = vsyncpa [#allocation9], 1
    %572 = vsyncpa [#allocation4], 1
    %573 = vsyncpa [#allocation13], 1

</llo_original>
